<compile_context>
chip_gen: v7x
topology: tpu7x:2x2x1
jax: 0.10.0
libtpu: 0.0.40
codegen_flags: <defaults>
</compile_context>

<pallas_src>
import functools

import jax
import jax.numpy as jnp
from jax.experimental import pallas as pl
from jax.experimental.pallas import tpu as pltpu


def fcn_head_kernel(x_ref, mask_ref, w1_ref, shift_ref, w2_ref, b2_ref,
                    o_ref, col_ref, *, tap_shifts, cin, use_vpu_1x1):
    """Fused FCNHead forward for one batch element.

    x_ref     : (1, Cin, HW)    f32   input, channels-first, spatial flattened
    mask_ref  : (9, HW)         f32   per-tap boundary-validity masks (0/1)
    w1_ref    : (Cint, 9*Cin)   bf16  3x3 conv weights * BN scale, tap-major K
    shift_ref : (Cint, 1)       f32   folded BN shift = beta - mean * scale
    w2_ref    : (Cout, Cint)    f32/bf16  1x1 conv weights (dtype per 1x1 path)
    b2_ref    : (Cout, 1)       f32   1x1 conv bias
    o_ref     : (1, Cout, HW)   f32   output (lane-dense spatial last dim)
    col_ref   : (9*Cin, HW)     bf16  VMEM scratch holding the im2col slab
    """
    x = x_ref[0]                                          # (Cin, HW) f32

    # im2col: 9 statically-shifted lane rotations + boundary masks, written
    # straight into the bf16 scratch (no f32 (9*Cin, HW) temporary, no
    # post-concat cast copy).  Mask multiply stays f32 (v5e has no bf16 VALU;
    # on v6e/v7x a bf16 mask path would halve VALU slots — left as-is for
    # portability, the big win is the removed f32 slab).
    for tap in range(9):
        lo = tap * cin            # static; bf16-tile aligned when Cin % 16 == 0
        if tap == 4:              # center tap: shift 0, mask all-ones
            col_ref[lo:lo + cin, :] = x.astype(jnp.bfloat16)
        else:
            shifted = jnp.roll(x, tap_shifts[tap], axis=1)
            col_ref[lo:lo + cin, :] = (
                shifted * mask_ref[tap:tap + 1, :]).astype(jnp.bfloat16)

    # 3x3 conv (BN scale pre-folded into w1) == one (Cint, 9*Cin) x (9*Cin, HW)
    # MXU matmul, f32 accumulation; then BN shift + ReLU on the VPU.
    # Dropout2d is identity in eval mode.
    h = jnp.dot(w1_ref[...], col_ref[...], preferred_element_type=jnp.float32)
    y = jnp.maximum(h + shift_ref[...], 0.0)              # (Cint, HW) f32

    if use_vpu_1x1:
        # Tiny 1x1 conv (Cout, Cint << 8): unrolled VPU broadcast-FMA beats an
        # MXU round-trip whose M dim is pure pipeline fill (v5e/v6e MRF drain).
        cint = y.shape[0]
        out = w2_ref[:, 0:1] * y[0:1, :]
        for c in range(1, cint):
            out = out + w2_ref[:, c:c + 1] * y[c:c + 1, :]
        out = out + b2_ref[...]
    else:
        # Production-size path: 1x1 conv == (Cout, Cint) x (Cint, HW) MXU matmul.
        out = jnp.dot(w2_ref[...], y.astype(jnp.bfloat16),
                      preferred_element_type=jnp.float32) + b2_ref[...]

    o_ref[0] = out.astype(o_ref.dtype)                    # lane-dense store


def fcn_head_forward(x_nchw, w1_oihw, bn_gamma, bn_beta, bn_mean, bn_var,
                     w2_oihw, b2, eps=1e-5):
    """FCNHead forward. x_nchw: (N, Cin, H, W) -> (N, Cout, H, W)."""
    N, Cin, H, W = x_nchw.shape
    Cint = w1_oihw.shape[0]
    Cout = w2_oihw.shape[0]
    HW = H * W
    assert HW % 128 == 0, "flattened spatial axis must fill full lanes"
    assert Cin % 8 == 0   # Cin % 16 additionally keeps bf16 scratch stores unmasked

    # --- glue (plain JAX): no transposes of x, no HBM padding pass ---
    xf = x_nchw.reshape(N, Cin, HW)                       # free reshape

    # Fold BatchNorm: BN(conv(x)) == conv_with_scaled_weights(x) + shift.
    scale = bn_gamma / jnp.sqrt(bn_var + eps)                        # (Cint,)
    shift = (bn_beta - bn_mean * scale).reshape(Cint, 1)             # f32
    w1s = w1_oihw * scale[:, None, None, None]
    # (Cint, Cin, 3, 3) -> (Cint, 9*Cin), tap-major K layout (kh, kw, cin), bf16.
    w1 = jnp.transpose(w1s, (0, 2, 3, 1)).reshape(Cint, 9 * Cin)
    w1 = w1.astype(jnp.bfloat16)

    use_vpu_1x1 = Cint <= 8                   # degenerate 1x1 -> stay on the VPU
    w2 = w2_oihw.reshape(Cout, Cint).astype(
        jnp.float32 if use_vpu_1x1 else jnp.bfloat16)
    b2v = b2.reshape(Cout, 1).astype(jnp.float32)

    # Static per-tap roll amounts and boundary masks over flattened positions.
    pos = jnp.arange(HW)
    prow, pcol = pos // W, pos % W
    tap_shifts, masks = [], []
    for tap in range(9):
        dh, dw = tap // 3 - 1, tap % 3 - 1
        tap_shifts.append((-(dh * W + dw)) % HW)          # python int, static
        masks.append((prow + dh >= 0) & (prow + dh < H) &
                     (pcol + dw >= 0) & (pcol + dw < W))
    mask = jnp.stack(masks, axis=0).astype(jnp.float32)   # (9, HW)

    kernel = functools.partial(fcn_head_kernel,
                               tap_shifts=tuple(tap_shifts),
                               cin=Cin, use_vpu_1x1=use_vpu_1x1)

    out_flat = pl.pallas_call(
        kernel,
        out_shape=jax.ShapeDtypeStruct((N, Cout, HW), jnp.float32),
        grid_spec=pltpu.PrefetchScalarGridSpec(
            num_scalar_prefetch=0,
            grid=(N,),
            in_specs=[
                pl.BlockSpec((1, Cin, HW), lambda n: (n, 0, 0)),
                pl.BlockSpec((9, HW), lambda n: (0, 0)),
                pl.BlockSpec((Cint, 9 * Cin), lambda n: (0, 0)),
                pl.BlockSpec((Cint, 1), lambda n: (0, 0)),
                pl.BlockSpec((Cout, Cint), lambda n: (0, 0)),
                pl.BlockSpec((Cout, 1), lambda n: (0, 0)),
            ],
            out_specs=pl.BlockSpec((1, Cout, HW), lambda n: (n, 0, 0)),
            scratch_shapes=[pltpu.VMEM((9 * Cin, HW), jnp.bfloat16)],
        ),
        compiler_params=pltpu.CompilerParams(
            dimension_semantics=("parallel",)),
    )(xf, mask, w1, shift, w2, b2v)

    return out_flat.reshape(N, Cout, H, W)                # free reshape


def fcn_head_reference(x_nchw, w1_oihw, bn_gamma, bn_beta, bn_mean, bn_var,
                       w2_oihw, b2, eps=1e-5):
    """Pure-JAX (f32) reference for correctness checking."""
    y = jax.lax.conv_general_dilated(
        x_nchw, w1_oihw, window_strides=(1, 1), padding="SAME",
        dimension_numbers=("NCHW", "OIHW", "NCHW"))
    scale = (bn_gamma / jnp.sqrt(bn_var + eps)).reshape(1, -1, 1, 1)
    shift = (bn_beta - bn_mean * (bn_gamma / jnp.sqrt(bn_var + eps))).reshape(1, -1, 1, 1)
    y = jnp.maximum(y * scale + shift, 0.0)
    y = jax.lax.conv_general_dilated(
        y, w2_oihw, window_strides=(1, 1), padding="VALID",
        dimension_numbers=("NCHW", "OIHW", "NCHW"))
    return y + b2.reshape(1, -1, 1, 1)


if __name__ == "__main__":
    # Small shapes consistent with FCNHead: inter_channels = in_channels // 4.
    N, Cin, H, W = 2, 16, 16, 16
    Cint = Cin // 4
    Cout = 6

    key = jax.random.PRNGKey(0)
    k = jax.random.split(key, 8)
    x = jax.random.normal(k[0], (N, Cin, H, W), jnp.float32)

    # Deterministic synthetic parameters (shapes from the module's __init__).
    w1 = jax.random.normal(k[1], (Cint, Cin, 3, 3), jnp.float32) * 0.1   # conv3x3, no bias
    bn_gamma = jax.random.normal(k[2], (Cint,), jnp.float32) * 0.1 + 1.0
    bn_beta = jax.random.normal(k[3], (Cint,), jnp.float32) * 0.1
    bn_mean = jax.random.normal(k[4], (Cint,), jnp.float32) * 0.1
    bn_var = jax.random.uniform(k[5], (Cint,), jnp.float32, 0.5, 1.5)
    w2 = jax.random.normal(k[6], (Cout, Cint, 1, 1), jnp.float32) * 0.1  # conv1x1 + bias
    b2 = jax.random.normal(k[7], (Cout,), jnp.float32) * 0.1

    out = fcn_head_forward(x, w1, bn_gamma, bn_beta, bn_mean, bn_var, w2, b2)
    out = jax.block_until_ready(out)

    ref = fcn_head_reference(x, w1, bn_gamma, bn_beta, bn_mean, bn_var, w2, b2)
    assert out.shape == (N, Cout, H, W)
    # bf16 matmul operands (f32 accumulate, BN scale folded into bf16 weights)
    # -> slightly looser tolerance vs the f32 reference.
    assert jnp.allclose(out, ref, atol=2e-2, rtol=2e-2), "mismatch vs reference"

    print("KERNEL_OK")
</pallas_src>

<mosaic_0001>
module attributes {stable_mosaic.version = 11 : i64} {
  func.func @fcn_head_kernel(%arg0: i32, %arg1: memref<1x16x256xf32, #tpu.memory_space<vmem>>, %arg2: memref<9x256xf32, #tpu.memory_space<vmem>>, %arg3: memref<4x144xbf16, #tpu.memory_space<vmem>>, %arg4: memref<4x1xf32, #tpu.memory_space<vmem>>, %arg5: memref<6x4xf32, #tpu.memory_space<vmem>>, %arg6: memref<6x1xf32, #tpu.memory_space<vmem>>, %arg7: memref<1x6x256xf32, #tpu.memory_space<vmem>>, %arg8: memref<144x256xbf16, #tpu.memory_space<vmem>>) attributes {dimension_semantics = [#tpu.dimension_semantics<parallel>], iteration_bounds = array<i64: 2>, scalar_prefetch = 0 : i64, scratch_operands = 1 : i64, tpu.core_type = #tpu.core_type<tc>, window_params = [{transform_indices = @transform_0, window_bounds = array<i64: 1, 16, 256>}, {pipeline_mode = #tpu.pipeline_mode<synchronous>, transform_indices = @transform_1, window_bounds = array<i64: 9, 256>}, {pipeline_mode = #tpu.pipeline_mode<synchronous>, transform_indices = @transform_2, window_bounds = array<i64: 4, 144>}, {pipeline_mode = #tpu.pipeline_mode<synchronous>, transform_indices = @transform_3, window_bounds = array<i64: 4, 1>}, {pipeline_mode = #tpu.pipeline_mode<synchronous>, transform_indices = @transform_4, window_bounds = array<i64: 6, 4>}, {pipeline_mode = #tpu.pipeline_mode<synchronous>, transform_indices = @transform_5, window_bounds = array<i64: 6, 1>}, {transform_indices = @transform_6, window_bounds = array<i64: 1, 6, 256>}]} {
    %c0 = arith.constant 0 : index
    %c0_0 = arith.constant 0 : index
    %c0_1 = arith.constant 0 : index
    %0 = vector.load %arg1[%c0, %c0_0, %c0_1] : memref<1x16x256xf32, #tpu.memory_space<vmem>>, vector<1x16x256xf32>
    %1 = vector.shape_cast %0 : vector<1x16x256xf32> to vector<16x256xf32>
    %2 = vector.extract_strided_slice %1 {offsets = [0, 239], sizes = [16, 17], strides = [1, 1]} : vector<16x256xf32> to vector<16x17xf32>
    %3 = vector.extract_strided_slice %1 {offsets = [0, 0], sizes = [16, 239], strides = [1, 1]} : vector<16x256xf32> to vector<16x239xf32>
    %4 = tpu.concatenate %2, %3 in 1 : vector<16x17xf32>, vector<16x239xf32> -> vector<16x256xf32>
    %c0_2 = arith.constant 0 : index
    %c0_3 = arith.constant 0 : index
    %5 = vector.load %arg2[%c0_2, %c0_3] : memref<9x256xf32, #tpu.memory_space<vmem>>, vector<1x256xf32>
    %6 = vector.broadcast %5 : vector<1x256xf32> to vector<16x256xf32>
    %7 = arith.mulf %4, %6 : vector<16x256xf32>
    %8 = arith.truncf %7 : vector<16x256xf32> to vector<16x256xbf16>
    %c0_4 = arith.constant 0 : index
    %c0_5 = arith.constant 0 : index
    %9 = vector.load %arg8[%c0_4, %c0_5] : memref<144x256xbf16, #tpu.memory_space<vmem>>, vector<16x256xbf16>
    tpu.vector_store %arg8[%c0_4, %c0_5], %8 {strides = array<i32>} : memref<144x256xbf16, #tpu.memory_space<vmem>>, vector<16x256xbf16>,
    %10 = vector.extract_strided_slice %1 {offsets = [0, 240], sizes = [16, 16], strides = [1, 1]} : vector<16x256xf32> to vector<16x16xf32>
    %11 = vector.extract_strided_slice %1 {offsets = [0, 0], sizes = [16, 240], strides = [1, 1]} : vector<16x256xf32> to vector<16x240xf32>
    %12 = tpu.concatenate %10, %11 in 1 : vector<16x16xf32>, vector<16x240xf32> -> vector<16x256xf32>
    %c1 = arith.constant 1 : index
    %c0_6 = arith.constant 0 : index
    %13 = vector.load %arg2[%c1, %c0_6] : memref<9x256xf32, #tpu.memory_space<vmem>>, vector<1x256xf32>
    %14 = vector.broadcast %13 : vector<1x256xf32> to vector<16x256xf32>
    %15 = arith.mulf %12, %14 : vector<16x256xf32>
    %16 = arith.truncf %15 : vector<16x256xf32> to vector<16x256xbf16>
    %c16 = arith.constant 16 : index
    %c0_7 = arith.constant 0 : index
    %17 = vector.load %arg8[%c16, %c0_7] : memref<144x256xbf16, #tpu.memory_space<vmem>>, vector<16x256xbf16>
    tpu.vector_store %arg8[%c16, %c0_7], %16 {strides = array<i32>} : memref<144x256xbf16, #tpu.memory_space<vmem>>, vector<16x256xbf16>,
    %18 = vector.extract_strided_slice %1 {offsets = [0, 241], sizes = [16, 15], strides = [1, 1]} : vector<16x256xf32> to vector<16x15xf32>
    %19 = vector.extract_strided_slice %1 {offsets = [0, 0], sizes = [16, 241], strides = [1, 1]} : vector<16x256xf32> to vector<16x241xf32>
    %20 = tpu.concatenate %18, %19 in 1 : vector<16x15xf32>, vector<16x241xf32> -> vector<16x256xf32>
    %c2 = arith.constant 2 : index
    %c0_8 = arith.constant 0 : index
    %21 = vector.load %arg2[%c2, %c0_8] : memref<9x256xf32, #tpu.memory_space<vmem>>, vector<1x256xf32>
    %22 = vector.broadcast %21 : vector<1x256xf32> to vector<16x256xf32>
    %23 = arith.mulf %20, %22 : vector<16x256xf32>
    %24 = arith.truncf %23 : vector<16x256xf32> to vector<16x256xbf16>
    %c32 = arith.constant 32 : index
    %c0_9 = arith.constant 0 : index
    %25 = vector.load %arg8[%c32, %c0_9] : memref<144x256xbf16, #tpu.memory_space<vmem>>, vector<16x256xbf16>
    tpu.vector_store %arg8[%c32, %c0_9], %24 {strides = array<i32>} : memref<144x256xbf16, #tpu.memory_space<vmem>>, vector<16x256xbf16>,
    %26 = vector.extract_strided_slice %1 {offsets = [0, 255], sizes = [16, 1], strides = [1, 1]} : vector<16x256xf32> to vector<16x1xf32>
    %27 = vector.extract_strided_slice %1 {offsets = [0, 0], sizes = [16, 255], strides = [1, 1]} : vector<16x256xf32> to vector<16x255xf32>
    %28 = tpu.concatenate %26, %27 in 1 : vector<16x1xf32>, vector<16x255xf32> -> vector<16x256xf32>
    %c3 = arith.constant 3 : index
    %c0_10 = arith.constant 0 : index
    %29 = vector.load %arg2[%c3, %c0_10] : memref<9x256xf32, #tpu.memory_space<vmem>>, vector<1x256xf32>
    %30 = vector.broadcast %29 : vector<1x256xf32> to vector<16x256xf32>
    %31 = arith.mulf %28, %30 : vector<16x256xf32>
    %32 = arith.truncf %31 : vector<16x256xf32> to vector<16x256xbf16>
    %c48 = arith.constant 48 : index
    %c0_11 = arith.constant 0 : index
    %33 = vector.load %arg8[%c48, %c0_11] : memref<144x256xbf16, #tpu.memory_space<vmem>>, vector<16x256xbf16>
    tpu.vector_store %arg8[%c48, %c0_11], %32 {strides = array<i32>} : memref<144x256xbf16, #tpu.memory_space<vmem>>, vector<16x256xbf16>,
    %34 = arith.truncf %1 : vector<16x256xf32> to vector<16x256xbf16>
    %c64 = arith.constant 64 : index
    %c0_12 = arith.constant 0 : index
    %35 = vector.load %arg8[%c64, %c0_12] : memref<144x256xbf16, #tpu.memory_space<vmem>>, vector<16x256xbf16>
    tpu.vector_store %arg8[%c64, %c0_12], %34 {strides = array<i32>} : memref<144x256xbf16, #tpu.memory_space<vmem>>, vector<16x256xbf16>,
    %36 = vector.extract_strided_slice %1 {offsets = [0, 1], sizes = [16, 255], strides = [1, 1]} : vector<16x256xf32> to vector<16x255xf32>
    %37 = vector.extract_strided_slice %1 {offsets = [0, 0], sizes = [16, 1], strides = [1, 1]} : vector<16x256xf32> to vector<16x1xf32>
    %38 = tpu.concatenate %36, %37 in 1 : vector<16x255xf32>, vector<16x1xf32> -> vector<16x256xf32>
    %c5 = arith.constant 5 : index
    %c0_13 = arith.constant 0 : index
    %39 = vector.load %arg2[%c5, %c0_13] : memref<9x256xf32, #tpu.memory_space<vmem>>, vector<1x256xf32>
    %40 = vector.broadcast %39 : vector<1x256xf32> to vector<16x256xf32>
    %41 = arith.mulf %38, %40 : vector<16x256xf32>
    %42 = arith.truncf %41 : vector<16x256xf32> to vector<16x256xbf16>
    %c80 = arith.constant 80 : index
    %c0_14 = arith.constant 0 : index
    %43 = vector.load %arg8[%c80, %c0_14] : memref<144x256xbf16, #tpu.memory_space<vmem>>, vector<16x256xbf16>
    tpu.vector_store %arg8[%c80, %c0_14], %42 {strides = array<i32>} : memref<144x256xbf16, #tpu.memory_space<vmem>>, vector<16x256xbf16>,
    %44 = vector.extract_strided_slice %1 {offsets = [0, 15], sizes = [16, 241], strides = [1, 1]} : vector<16x256xf32> to vector<16x241xf32>
    %45 = vector.extract_strided_slice %1 {offsets = [0, 0], sizes = [16, 15], strides = [1, 1]} : vector<16x256xf32> to vector<16x15xf32>
    %46 = tpu.concatenate %44, %45 in 1 : vector<16x241xf32>, vector<16x15xf32> -> vector<16x256xf32>
    %c6 = arith.constant 6 : index
    %c0_15 = arith.constant 0 : index
    %47 = vector.load %arg2[%c6, %c0_15] : memref<9x256xf32, #tpu.memory_space<vmem>>, vector<1x256xf32>
    %48 = vector.broadcast %47 : vector<1x256xf32> to vector<16x256xf32>
    %49 = arith.mulf %46, %48 : vector<16x256xf32>
    %50 = arith.truncf %49 : vector<16x256xf32> to vector<16x256xbf16>
    %c96 = arith.constant 96 : index
    %c0_16 = arith.constant 0 : index
    %51 = vector.load %arg8[%c96, %c0_16] : memref<144x256xbf16, #tpu.memory_space<vmem>>, vector<16x256xbf16>
    tpu.vector_store %arg8[%c96, %c0_16], %50 {strides = array<i32>} : memref<144x256xbf16, #tpu.memory_space<vmem>>, vector<16x256xbf16>,
    %52 = vector.extract_strided_slice %1 {offsets = [0, 16], sizes = [16, 240], strides = [1, 1]} : vector<16x256xf32> to vector<16x240xf32>
    %53 = vector.extract_strided_slice %1 {offsets = [0, 0], sizes = [16, 16], strides = [1, 1]} : vector<16x256xf32> to vector<16x16xf32>
    %54 = tpu.concatenate %52, %53 in 1 : vector<16x240xf32>, vector<16x16xf32> -> vector<16x256xf32>
    %c7 = arith.constant 7 : index
    %c0_17 = arith.constant 0 : index
    %55 = vector.load %arg2[%c7, %c0_17] : memref<9x256xf32, #tpu.memory_space<vmem>>, vector<1x256xf32>
    %56 = vector.broadcast %55 : vector<1x256xf32> to vector<16x256xf32>
    %57 = arith.mulf %54, %56 : vector<16x256xf32>
    %58 = arith.truncf %57 : vector<16x256xf32> to vector<16x256xbf16>
    %c112 = arith.constant 112 : index
    %c0_18 = arith.constant 0 : index
    %59 = vector.load %arg8[%c112, %c0_18] : memref<144x256xbf16, #tpu.memory_space<vmem>>, vector<16x256xbf16>
    tpu.vector_store %arg8[%c112, %c0_18], %58 {strides = array<i32>} : memref<144x256xbf16, #tpu.memory_space<vmem>>, vector<16x256xbf16>,
    %60 = vector.extract_strided_slice %1 {offsets = [0, 17], sizes = [16, 239], strides = [1, 1]} : vector<16x256xf32> to vector<16x239xf32>
    %61 = vector.extract_strided_slice %1 {offsets = [0, 0], sizes = [16, 17], strides = [1, 1]} : vector<16x256xf32> to vector<16x17xf32>
    %62 = tpu.concatenate %60, %61 in 1 : vector<16x239xf32>, vector<16x17xf32> -> vector<16x256xf32>
    %c8 = arith.constant 8 : index
    %c0_19 = arith.constant 0 : index
    %63 = vector.load %arg2[%c8, %c0_19] : memref<9x256xf32, #tpu.memory_space<vmem>>, vector<1x256xf32>
    %64 = vector.broadcast %63 : vector<1x256xf32> to vector<16x256xf32>
    %65 = arith.mulf %62, %64 : vector<16x256xf32>
    %66 = arith.truncf %65 : vector<16x256xf32> to vector<16x256xbf16>
    %c128 = arith.constant 128 : index
    %c0_20 = arith.constant 0 : index
    %67 = vector.load %arg8[%c128, %c0_20] : memref<144x256xbf16, #tpu.memory_space<vmem>>, vector<16x256xbf16>
    tpu.vector_store %arg8[%c128, %c0_20], %66 {strides = array<i32>} : memref<144x256xbf16, #tpu.memory_space<vmem>>, vector<16x256xbf16>,
    %c0_21 = arith.constant 0 : index
    %c0_22 = arith.constant 0 : index
    %68 = vector.load %arg3[%c0_21, %c0_22] : memref<4x144xbf16, #tpu.memory_space<vmem>>, vector<4x144xbf16>
    %c0_23 = arith.constant 0 : index
    %c0_24 = arith.constant 0 : index
    %69 = vector.load %arg8[%c0_23, %c0_24] : memref<144x256xbf16, #tpu.memory_space<vmem>>, vector<144x256xbf16>
    %cst = arith.constant dense<0.000000e+00> : vector<4x256xf32>
    %70 = tpu.matmul %68, %69, %cst {dimension_numbers = #tpu.dot_dimension_numbers<[1], [0], [0], [1], [0, 0, 1, 1], [], []>} : vector<4x144xbf16>, vector<144x256xbf16>, vector<4x256xf32> -> vector<4x256xf32>
    %c0_25 = arith.constant 0 : index
    %c0_26 = arith.constant 0 : index
    %71 = vector.load %arg4[%c0_25, %c0_26] : memref<4x1xf32, #tpu.memory_space<vmem>>, vector<4x1xf32>
    %72 = vector.broadcast %71 : vector<4x1xf32> to vector<4x256xf32>
    %73 = arith.addf %70, %72 : vector<4x256xf32>
    %cst_27 = arith.constant 0.000000e+00 : f32
    %74 = vector.broadcast %cst_27 : f32 to vector<4x256xf32>
    %75 = arith.maximumf %73, %74 : vector<4x256xf32>
    %c0_28 = arith.constant 0 : index
    %c0_29 = arith.constant 0 : index
    %76 = vector.load %arg5[%c0_28, %c0_29] : memref<6x4xf32, #tpu.memory_space<vmem>>, vector<6x1xf32>
    %77 = vector.extract_strided_slice %75 {offsets = [0, 0], sizes = [1, 256], strides = [1, 1]} : vector<4x256xf32> to vector<1x256xf32>
    %78 = vector.broadcast %76 : vector<6x1xf32> to vector<6x256xf32>
    %79 = vector.broadcast %77 : vector<1x256xf32> to vector<6x256xf32>
    %80 = arith.mulf %78, %79 : vector<6x256xf32>
    %c0_30 = arith.constant 0 : index
    %c1_31 = arith.constant 1 : index
    %81 = vector.load %arg5[%c0_30, %c1_31] : memref<6x4xf32, #tpu.memory_space<vmem>>, vector<6x1xf32>
    %82 = vector.extract_strided_slice %75 {offsets = [1, 0], sizes = [1, 256], strides = [1, 1]} : vector<4x256xf32> to vector<1x256xf32>
    %83 = vector.broadcast %81 : vector<6x1xf32> to vector<6x256xf32>
    %84 = vector.broadcast %82 : vector<1x256xf32> to vector<6x256xf32>
    %85 = arith.mulf %83, %84 : vector<6x256xf32>
    %86 = arith.addf %80, %85 : vector<6x256xf32>
    %c0_32 = arith.constant 0 : index
    %c2_33 = arith.constant 2 : index
    %87 = vector.load %arg5[%c0_32, %c2_33] : memref<6x4xf32, #tpu.memory_space<vmem>>, vector<6x1xf32>
    %88 = vector.extract_strided_slice %75 {offsets = [2, 0], sizes = [1, 256], strides = [1, 1]} : vector<4x256xf32> to vector<1x256xf32>
    %89 = vector.broadcast %87 : vector<6x1xf32> to vector<6x256xf32>
    %90 = vector.broadcast %88 : vector<1x256xf32> to vector<6x256xf32>
    %91 = arith.mulf %89, %90 : vector<6x256xf32>
    %92 = arith.addf %86, %91 : vector<6x256xf32>
    %c0_34 = arith.constant 0 : index
    %c3_35 = arith.constant 3 : index
    %93 = vector.load %arg5[%c0_34, %c3_35] : memref<6x4xf32, #tpu.memory_space<vmem>>, vector<6x1xf32>
    %94 = vector.extract_strided_slice %75 {offsets = [3, 0], sizes = [1, 256], strides = [1, 1]} : vector<4x256xf32> to vector<1x256xf32>
    %95 = vector.broadcast %93 : vector<6x1xf32> to vector<6x256xf32>
    %96 = vector.broadcast %94 : vector<1x256xf32> to vector<6x256xf32>
    %97 = arith.mulf %95, %96 : vector<6x256xf32>
    %98 = arith.addf %92, %97 : vector<6x256xf32>
    %c0_36 = arith.constant 0 : index
    %c0_37 = arith.constant 0 : index
    %99 = vector.load %arg6[%c0_36, %c0_37] : memref<6x1xf32, #tpu.memory_space<vmem>>, vector<6x1xf32>
    %100 = vector.broadcast %99 : vector<6x1xf32> to vector<6x256xf32>
    %101 = arith.addf %98, %100 : vector<6x256xf32>
    %c0_38 = arith.constant 0 : index
    %c0_39 = arith.constant 0 : index
    %c0_40 = arith.constant 0 : index
    %102 = vector.load %arg7[%c0_38, %c0_39, %c0_40] : memref<1x6x256xf32, #tpu.memory_space<vmem>>, vector<1x6x256xf32>
    %103 = vector.shape_cast %102 : vector<1x6x256xf32> to vector<6x256xf32>
    %104 = vector.shape_cast %101 : vector<6x256xf32> to vector<1x6x256xf32>
    tpu.vector_store %arg7[%c0_38, %c0_39, %c0_40], %104 {strides = array<i32>} : memref<1x6x256xf32, #tpu.memory_space<vmem>>, vector<1x6x256xf32>,
    return
  }
  func.func @transform_0(%arg0: i32) -> (i32, i32, i32) {
    %c0_i32 = arith.constant 0 : i32
    %c0_i32_0 = arith.constant 0 : i32
    %c0_i32_1 = arith.constant 0 : i32
    return %arg0, %c0_i32, %c0_i32_0 : i32, i32, i32
  }
  func.func @transform_1(%arg0: i32) -> (i32, i32) {
    %c0_i32 = arith.constant 0 : i32
    %c0_i32_0 = arith.constant 0 : i32
    %c0_i32_1 = arith.constant 0 : i32
    return %c0_i32, %c0_i32_0 : i32, i32
  }
  func.func @transform_2(%arg0: i32) -> (i32, i32) {
    %c0_i32 = arith.constant 0 : i32
    %c0_i32_0 = arith.constant 0 : i32
    %c0_i32_1 = arith.constant 0 : i32
    return %c0_i32, %c0_i32_0 : i32, i32
  }
  func.func @transform_3(%arg0: i32) -> (i32, i32) {
    %c0_i32 = arith.constant 0 : i32
    %c0_i32_0 = arith.constant 0 : i32
    %c0_i32_1 = arith.constant 0 : i32
    return %c0_i32, %c0_i32_0 : i32, i32
  }
  func.func @transform_4(%arg0: i32) -> (i32, i32) {
    %c0_i32 = arith.constant 0 : i32
    %c0_i32_0 = arith.constant 0 : i32
    %c0_i32_1 = arith.constant 0 : i32
    return %c0_i32, %c0_i32_0 : i32, i32
  }
  func.func @transform_5(%arg0: i32) -> (i32, i32) {
    %c0_i32 = arith.constant 0 : i32
    %c0_i32_0 = arith.constant 0 : i32
    %c0_i32_1 = arith.constant 0 : i32
    return %c0_i32, %c0_i32_0 : i32, i32
  }
  func.func @transform_6(%arg0: i32) -> (i32, i32, i32) {
    %c0_i32 = arith.constant 0 : i32
    %c0_i32_0 = arith.constant 0 : i32
    %c0_i32_1 = arith.constant 0 : i32
    return %arg0, %c0_i32, %c0_i32_0 : i32, i32, i32
  }
}

</mosaic_0001>

<llo_original>
// kernel: tpu_custom_call.1
$region0: #{tpu_custom_call.1}
  #allocation0 [shape = 'u32[]', space=smem, size = 0x4, offset = 0x4, fixed_abs, tag = 'smem constant byte address 0x4 - core index']
  #allocation1 [shape = 'u32[144,128]{1,0:T(1,128)}', space=vmem, size = 0x12000, scoped, tag = 'internal scratch']
  #allocation2 [shape = 'bf16[144,256]{1,0:T(16,128)(2,1)}', space=vmem, size = 0x12000, scoped, tag = 'scratch operand']
  %s0 = inlined_call_operand.hbm [shape: f32[2,16,256], index: 0, kind: input, shape index: {}]
  %s1 = inlined_call_operand.hbm [shape: f32[9,256], index: 1, kind: input, shape index: {}]
  %s2 = inlined_call_operand.vmem [shape: bf16[4,144], index: 2, kind: input, shape index: {}]
  %s3 = inlined_call_operand.vmem [shape: f32[4,1], index: 3, kind: input, shape index: {}]
  %s4 = inlined_call_operand.vmem [shape: f32[6,4], index: 4, kind: input, shape index: {}]
  %s5 = inlined_call_operand.vmem [shape: f32[6,1], index: 5, kind: input, shape index: {}]
  %s6 = inlined_call_operand.vmem [shape: f32[2,6,256], index: 6, kind: output, shape index: {}]
  %s7 = sld [smem:[#allocation0]]
  $region65: #{tpu_custom_call.1} parent=0
    _
  %s9 = ssub.s32 1, %s7
  %s10 = scalar_select 0, %s9, %s7
  $region1: #{tpu_custom_call.1} parent=0
    #allocation3 [shape = 'u8[32768]{0}', space=vmem, size = 0x8000, scoped, tag = 'input window, operand 0']
    #allocation4 [shape = 's32[2]{0}', space=sflag, size = 0x8, scoped, tag = 'scoped memory for tpu_custom_call.1']
    #allocation5 [shape = 'u8[16384]{0}', space=vmem, size = 0x4000, scoped, tag = 'input window, operand 1, single buffered']
    #allocation6 [shape = 's32[1]{0}', space=sflag, size = 0x4, scoped, tag = 'scoped memory for tpu_custom_call.1']
    %11 = vsyncpa [#allocation4], 0
    %s12 = scalar_lea.sflag [#allocation4], 1
    %13 = vsyncpa %s12, 0
    %14 = vsyncpa [#allocation6], 0
    loop: start=0, step=1, limit=4
    $region2: #{tpu_custom_call.1} parent=1 // loop_pre_header
      _
    $region3: #{tpu_custom_call.1} parent=1 // loop_header
      %s16 = sphi 0, %s20
      %p17 = scmp.ge.s32.totalorder %s16, 4
      %s26 = sphi 0, %s28
      %s29 = sphi 0, %s26
      %s30 = sphi 0, %s29
      %s46 = sphi 0, %s30
      %s50 = sphi 0, %s50
      %s52 = sphi 0, %s50
      %s53 = sphi 0, %s52
      %s67 = sphi 0, %s53
      %s71 = sphi 0, %s71
      %s73 = sphi 0, %s71
      %s74 = sphi 0, %s73
      %s88 = sphi 0, %s74
      %s92 = sphi 0, %s92
      %s94 = sphi 0, %s92
      %s95 = sphi 0, %s94
      %s109 = sphi 0, %s95
      %s113 = sphi 0, %s113
      %s115 = sphi 0, %s113
      %s116 = sphi 0, %s115
      %s130 = sphi 0, %s116
      %s134 = sphi 0, %s134
      %s136 = sphi 0, %s134
      %s137 = sphi 0, %s136
      %s151 = sphi 0, %s137
      %s157 = sphi 0, %s159
      %s160 = sphi 0, %s157
      %s161 = sphi 0, %s160
      %s177 = sphi 0, %s161
    $region4: #{tpu_custom_call.1} parent=1 // loop_header_branch
      %19 = sbr.rel (%p17) target = $region8
    $region5: #{tpu_custom_call.1} parent=1 // loop_body
      %s21 = ssub.s32 %s16, 1
      %s22 = ssub.s32 %s16, 2
      %s23 = sadd.s32 %s16, 1
      %s24 = ssub.s32 %s16, %s23
      %p25 = scmp.eq.s32.totalorder %s24, 0
      %s27 = sadd.s32 %s26, 1
      %s28 = scalar_select %p25, %s26, %s27
      %p31 = pneg %p25
      %p32 = scmp.eq.s32.totalorder %s16, 1
      %p33 = por %p31, %p32
      %p34 = scmp.ne.s32.totalorder %s26, %s29
      %p35 = scmp.eq.s32.totalorder %s16, 0
      %p36 = por %p34, %p35
      %p37 = scmp.ne.s32.totalorder %s26, %s29
      %p38 = scmp.eq.s32.totalorder %s21, 1
      %p39 = por %p37, %p38
      %p40 = scmp.ne.s32.totalorder %s29, %s30
      %p41 = scmp.eq.s32.totalorder %s21, 0
      %p42 = por %p40, %p41
      %p43 = scmp.ne.s32.totalorder %s29, %s30
      %p44 = scmp.eq.s32.totalorder %s22, 1
      %p45 = por %p43, %p44
      %p47 = scmp.ne.s32.totalorder %s30, %s46
      %p48 = scmp.eq.s32.totalorder %s22, 0
      %p49 = por %p47, %p48
      %s51 = sadd.s32 %s50, 1
      %p54 = scmp.eq.s32.totalorder %s16, 1
      %p55 = scmp.ne.s32.totalorder %s50, %s52
      %p56 = scmp.eq.s32.totalorder %s16, 0
      %p57 = por %p55, %p56
      %p58 = scmp.ne.s32.totalorder %s50, %s52
      %p59 = scmp.eq.s32.totalorder %s21, 1
      %p60 = por %p58, %p59
      %p61 = scmp.ne.s32.totalorder %s52, %s53
      %p62 = scmp.eq.s32.totalorder %s21, 0
      %p63 = por %p61, %p62
      %p64 = scmp.ne.s32.totalorder %s52, %s53
      %p65 = scmp.eq.s32.totalorder %s22, 1
      %p66 = por %p64, %p65
      %p68 = scmp.ne.s32.totalorder %s53, %s67
      %p69 = scmp.eq.s32.totalorder %s22, 0
      %p70 = por %p68, %p69
      %s72 = sadd.s32 %s71, 1
      %p75 = scmp.eq.s32.totalorder %s16, 1
      %p76 = scmp.ne.s32.totalorder %s71, %s73
      %p77 = scmp.eq.s32.totalorder %s16, 0
      %p78 = por %p76, %p77
      %p79 = scmp.ne.s32.totalorder %s71, %s73
      %p80 = scmp.eq.s32.totalorder %s21, 1
      %p81 = por %p79, %p80
      %p82 = scmp.ne.s32.totalorder %s73, %s74
      %p83 = scmp.eq.s32.totalorder %s21, 0
      %p84 = por %p82, %p83
      %p85 = scmp.ne.s32.totalorder %s73, %s74
      %p86 = scmp.eq.s32.totalorder %s22, 1
      %p87 = por %p85, %p86
      %p89 = scmp.ne.s32.totalorder %s74, %s88
      %p90 = scmp.eq.s32.totalorder %s22, 0
      %p91 = por %p89, %p90
      %s93 = sadd.s32 %s92, 1
      %p96 = scmp.eq.s32.totalorder %s16, 1
      %p97 = scmp.ne.s32.totalorder %s92, %s94
      %p98 = scmp.eq.s32.totalorder %s16, 0
      %p99 = por %p97, %p98
      %p100 = scmp.ne.s32.totalorder %s92, %s94
      %p101 = scmp.eq.s32.totalorder %s21, 1
      %p102 = por %p100, %p101
      %p103 = scmp.ne.s32.totalorder %s94, %s95
      %p104 = scmp.eq.s32.totalorder %s21, 0
      %p105 = por %p103, %p104
      %p106 = scmp.ne.s32.totalorder %s94, %s95
      %p107 = scmp.eq.s32.totalorder %s22, 1
      %p108 = por %p106, %p107
      %p110 = scmp.ne.s32.totalorder %s95, %s109
      %p111 = scmp.eq.s32.totalorder %s22, 0
      %p112 = por %p110, %p111
      %s114 = sadd.s32 %s113, 1
      %p117 = scmp.eq.s32.totalorder %s16, 1
      %p118 = scmp.ne.s32.totalorder %s113, %s115
      %p119 = scmp.eq.s32.totalorder %s16, 0
      %p120 = por %p118, %p119
      %p121 = scmp.ne.s32.totalorder %s113, %s115
      %p122 = scmp.eq.s32.totalorder %s21, 1
      %p123 = por %p121, %p122
      %p124 = scmp.ne.s32.totalorder %s115, %s116
      %p125 = scmp.eq.s32.totalorder %s21, 0
      %p126 = por %p124, %p125
      %p127 = scmp.ne.s32.totalorder %s115, %s116
      %p128 = scmp.eq.s32.totalorder %s22, 1
      %p129 = por %p127, %p128
      %p131 = scmp.ne.s32.totalorder %s116, %s130
      %p132 = scmp.eq.s32.totalorder %s22, 0
      %p133 = por %p131, %p132
      %s135 = sadd.s32 %s134, 1
      %p138 = scmp.eq.s32.totalorder %s16, 1
      %p139 = scmp.ne.s32.totalorder %s134, %s136
      %p140 = scmp.eq.s32.totalorder %s16, 0
      %p141 = por %p139, %p140
      %p142 = scmp.ne.s32.totalorder %s134, %s136
      %p143 = scmp.eq.s32.totalorder %s21, 1
      %p144 = por %p142, %p143
      %p145 = scmp.ne.s32.totalorder %s136, %s137
      %p146 = scmp.eq.s32.totalorder %s21, 0
      %p147 = por %p145, %p146
      %p148 = scmp.ne.s32.totalorder %s136, %s137
      %p149 = scmp.eq.s32.totalorder %s22, 1
      %p150 = por %p148, %p149
      %p152 = scmp.ne.s32.totalorder %s137, %s151
      %p153 = scmp.eq.s32.totalorder %s22, 0
      %p154 = por %p152, %p153
      %s155 = ssub.s32 %s16, %s23
      %p156 = scmp.eq.s32.totalorder %s155, 0
      %s158 = sadd.s32 %s157, 1
      %s159 = scalar_select %p156, %s157, %s158
      %p162 = pneg %p156
      %p163 = scmp.eq.s32.totalorder %s16, 1
      %p164 = por %p162, %p163
      %p165 = scmp.ne.s32.totalorder %s157, %s160
      %p166 = scmp.eq.s32.totalorder %s16, 0
      %p167 = por %p165, %p166
      %p168 = scmp.ne.s32.totalorder %s157, %s160
      %p169 = scmp.eq.s32.totalorder %s21, 1
      %p170 = por %p168, %p169
      %p171 = scmp.ne.s32.totalorder %s160, %s161
      %p172 = scmp.eq.s32.totalorder %s21, 0
      %p173 = por %p171, %p172
      %p174 = scmp.ne.s32.totalorder %s160, %s161
      %p175 = scmp.eq.s32.totalorder %s22, 1
      %p176 = por %p174, %p175
      %p178 = scmp.ne.s32.totalorder %s161, %s177
      %p179 = scmp.eq.s32.totalorder %s22, 0
      %p180 = por %p178, %p179
      %p181 = scmp.le.s32.totalorder 1, %s16
      %p182 = scmp.lt.s32.totalorder %s16, 3
      %p183 = pnand %p181, %p182
      %p184 = pneg %p183
      // Predicated region
      $region9: #{tpu_custom_call.1} parent=5 // pred_check
        _
      $region10: #{tpu_custom_call.1} parent=5 // pred_check_branch
        %186 = sbr.rel (%p183) target = $region12
      $region11: #{tpu_custom_call.1} parent=5 // pred_region
        %s187 = ssub.s32 %s16, 1
        // Predicated region
        $region13: #{tpu_custom_call.1} parent=11 // pred_check
          %p188 = pneg %p63
        $region14: #{tpu_custom_call.1} parent=11 // pred_check_branch
          %190 = sbr.rel (%p188) target = $region16
        $region15: #{tpu_custom_call.1} parent=11 // pred_region
          %s192 = ssub.s32 512, 512
          %193 = vsyncadd [#allocation6], %s192
          %s194 = sshll.u32 [#allocation5], 4
          %s195 = int_to_ptr.vmem [resolvable:$true] %s194
          %200 = dma.hbm_to_vmem [thread:$0]  %s1, 512, %s195, [#allocation6], 256, 256, 16
        $region16: #{tpu_custom_call.1} parent=11 // pred_fallthru
          _
        // Predicated region
        $region17: #{tpu_custom_call.1} parent=11 // pred_check
          %p201 = pneg %p84
        $region18: #{tpu_custom_call.1} parent=11 // pred_check_branch
          %203 = sbr.rel (%p201) target = $region20
        $region19: #{tpu_custom_call.1} parent=11 // pred_region
          _
        $region20: #{tpu_custom_call.1} parent=11 // pred_fallthru
          _
        // Predicated region
        $region21: #{tpu_custom_call.1} parent=11 // pred_check
          %p204 = pneg %p105
        $region22: #{tpu_custom_call.1} parent=11 // pred_check_branch
          %206 = sbr.rel (%p204) target = $region24
        $region23: #{tpu_custom_call.1} parent=11 // pred_region
          _
        $region24: #{tpu_custom_call.1} parent=11 // pred_fallthru
          _
        // Predicated region
        $region25: #{tpu_custom_call.1} parent=11 // pred_check
          %p207 = pneg %p126
        $region26: #{tpu_custom_call.1} parent=11 // pred_check_branch
          %209 = sbr.rel (%p207) target = $region28
        $region27: #{tpu_custom_call.1} parent=11 // pred_region
          _
        $region28: #{tpu_custom_call.1} parent=11 // pred_fallthru
          _
        // Predicated region
        $region29: #{tpu_custom_call.1} parent=11 // pred_check
          %p210 = pneg %p147
        $region30: #{tpu_custom_call.1} parent=11 // pred_check_branch
          %212 = sbr.rel (%p210) target = $region32
        $region31: #{tpu_custom_call.1} parent=11 // pred_region
          _
        $region32: #{tpu_custom_call.1} parent=11 // pred_fallthru
          _
      $region12: #{tpu_custom_call.1} parent=5 // pred_fallthru
        _
      %p213 = scmp.lt.s32.totalorder %s16, 2
      // Predicated region
      $region33: #{tpu_custom_call.1} parent=5 // pred_check
        %p214 = pneg %p213
      $region34: #{tpu_custom_call.1} parent=5 // pred_check_branch
        %216 = sbr.rel (%p214) target = $region36
      $region35: #{tpu_custom_call.1} parent=5 // pred_region
        // Predicated region
        $region37: #{tpu_custom_call.1} parent=35 // pred_check
          %p217 = pneg %p36
        $region38: #{tpu_custom_call.1} parent=35 // pred_check_branch
          %219 = sbr.rel (%p217) target = $region40
        $region39: #{tpu_custom_call.1} parent=35 // pred_region
          %s220 = sand.u32 %s26, 1
          %s221 = scalar_lea.sflag [#allocation4], %s220
          %s222 = sand.u32 %s26, 1
          %s223 = smul.addr %s222, 32
          %s224 = scalar_lea.vmem [#allocation3], %s223
          %s226 = ssub.s32 512, 512
          %227 = vsyncadd %s221, %s226
          %s228 = smul.addr %s16, 4
          %s229 = smul.addr %s228, 128
          %s230 = scalar_lea.hbm %s0, %s229
          %s231 = sshll.u32 %s224, 4
          %s232 = int_to_ptr.vmem [resolvable:$true] %s231
          %237 = dma.hbm_to_vmem [thread:$0]  %s230, 512, %s232, %s221, 256, 256, 16
        $region40: #{tpu_custom_call.1} parent=35 // pred_fallthru
          _
      $region36: #{tpu_custom_call.1} parent=5 // pred_fallthru
        _
      %p238 = scmp.le.s32.totalorder 1, %s16
      %p239 = scmp.lt.s32.totalorder %s16, 3
      %p240 = pnand %p238, %p239
      %p241 = pneg %p240
      // Predicated region
      $region41: #{tpu_custom_call.1} parent=5 // pred_check
        _
      $region42: #{tpu_custom_call.1} parent=5 // pred_check_branch
        %243 = sbr.rel (%p240) target = $region44
      $region43: #{tpu_custom_call.1} parent=5 // pred_region
        %s244 = ssub.s32 %s16, 1
        %s245 = sand.u32 %s29, 1
        %s246 = scalar_lea.sflag [#allocation4], %s245
        %s247 = sand.u32 %s29, 1
        %s248 = smul.addr %s247, 32
        %s249 = scalar_lea.vmem [#allocation3], %s248
        // Predicated region
        $region45: #{tpu_custom_call.1} parent=43 // pred_check
          %p250 = pneg %p42
        $region46: #{tpu_custom_call.1} parent=43 // pred_check_branch
          %252 = sbr.rel (%p250) target = $region48
        $region47: #{tpu_custom_call.1} parent=43 // pred_region
          %253 = dma.done %s246, 512
        $region48: #{tpu_custom_call.1} parent=43 // pred_fallthru
          _
        // Predicated region
        $region49: #{tpu_custom_call.1} parent=43 // pred_check
          %p254 = pneg %p63
        $region50: #{tpu_custom_call.1} parent=43 // pred_check_branch
          %256 = sbr.rel (%p254) target = $region52
        $region51: #{tpu_custom_call.1} parent=43 // pred_region
          %257 = dma.done [#allocation6], 512
        $region52: #{tpu_custom_call.1} parent=43 // pred_fallthru
          _
        %s258 = sand.u32 %s29, 1
        %s259 = scalar_lea.sflag [#allocation4], %s258
        %s260 = sand.u32 %s29, 1
        %s261 = smul.addr %s260, 32
        %s262 = scalar_lea.vmem [#allocation3], %s261
        %p263 = pneg %p42
        %p264 = pneg %p39
        %p265 = pneg %p63
        %p266 = pneg %p60
        %p267 = pneg %p84
        %p268 = pneg %p81
        %p269 = pneg %p105
        %p270 = pneg %p102
        %p271 = pneg %p126
        %p272 = pneg %p123
        %p273 = pneg %p147
        %p274 = pneg %p144
        %p275 = pneg %p173
        %p276 = pneg %p170
        %p277 = scmp.lt.s32.totalorder %s21, 1
        %s278 = scalar_select %p277, %s21, 1
        %s279 = smul.addr %s278, 2
        %s280 = smul.addr %s279, 8
        %s281 = scalar_lea.vmem %s6, %s280
        %p282 = scmp.lt.s32.totalorder %s21, 1
        %s283 = scalar_select %p282, %s21, 1
        %s284 = smul.addr %s283, 2
        %s285 = smul.addr %s284, 8
        %s286 = scalar_lea.vmem %s6, %s285
        %v288 = vld [vmem:[%s249] sm:$0xff]
        %v289 = vld [vmem:[%s249 + $0x8] sm:$0xff]
        %v290 = vld [vmem:[%s249 + $0x10] sm:$0xff]
        %v291 = vld [vmem:[%s249 + $0x18] sm:$0xff]
        %294 = vrot.lane.b32.xlu0 %v289, 17
        %v295 = vpop.permute.xlu0 %294
        %296 = vrot.lane.b32.xlu0 %v291, 17
        %v297 = vpop.permute.xlu0 %296
        %302 = vrot.lane.b32.xlu0 %v288, 17
        %v303 = vpop.permute.xlu0 %302
        %304 = vrot.lane.b32.xlu0 %v290, 17
        %v305 = vpop.permute.xlu0 %304
        %vm306 = vcmask 138240
        %v307 = vsel %vm306, %v303, %v295
        %v308 = vsel %vm306, %v305, %v297
        %v313 = vsel %vm306, %v295, %v303
        %v314 = vsel %vm306, %v297, %v305
        %v315 = vld [vmem:[#allocation5] ss:$8 sm:$0x3]
        %v317 = vlaneseq
        %v318 = vshrl.u32 %v317, 7
        %v319 = vsub.s32 0, %v318
        %v320 = vrot.slane %v315, %v319
        %v321 = vlaneseq
        %v322 = vshrl.u32 %v321, 7
        %v323 = vsub.s32 1, %v322
        %v324 = vrot.slane %v315, %v323
        %v327 = vmul.f32 %v313, %v320
        %v328 = vmul.f32 %v307, %v324
        %v329 = vmul.f32 %v314, %v320
        %v330 = vmul.f32 %v308, %v324
        %v331 = vpack.c.bf16 %v329, %v327
        %v332 = vpack.c.bf16 %v330, %v328
        %333 = vst [vmem:[#allocation2] sm:$0xff] %v331
        %334 = vst [vmem:[#allocation2 + $0x8] sm:$0xff] %v332
        %335 = vrot.lane.b32.xlu0 %v289, 16
        %v336 = vpop.permute.xlu0 %335
        %337 = vrot.lane.b32.xlu0 %v291, 16
        %v338 = vpop.permute.xlu0 %337
        %341 = vrot.lane.b32.xlu0 %v288, 16
        %v342 = vpop.permute.xlu0 %341
        %343 = vrot.lane.b32.xlu0 %v290, 16
        %v344 = vpop.permute.xlu0 %343
        %vm345 = vcmask 130048
        %v346 = vsel %vm345, %v342, %v336
        %v347 = vsel %vm345, %v344, %v338
        %v352 = vsel %vm345, %v336, %v342
        %v353 = vsel %vm345, %v338, %v344
        %s354 = scalar_lea.vmem [#allocation5], 1
        %v355 = vld [vmem:[%s354] ss:$8 sm:$0x3]
        %v357 = vlaneseq
        %v358 = vshrl.u32 %v357, 7
        %v359 = vsub.s32 0, %v358
        %v360 = vrot.slane %v355, %v359
        %v361 = vlaneseq
        %v362 = vshrl.u32 %v361, 7
        %v363 = vsub.s32 1, %v362
        %v364 = vrot.slane %v355, %v363
        %v367 = vmul.f32 %v352, %v360
        %v368 = vmul.f32 %v346, %v364
        %v369 = vmul.f32 %v353, %v360
        %v370 = vmul.f32 %v347, %v364
        %v371 = vpack.c.bf16 %v369, %v367
        %v372 = vpack.c.bf16 %v370, %v368
        %373 = vst [vmem:[#allocation2 + $0x10] sm:$0xff] %v371
        %374 = vst [vmem:[#allocation2 + $0x18] sm:$0xff] %v372
        %375 = vrot.lane.b32.xlu0 %v289, 15
        %v376 = vpop.permute.xlu0 %375
        %377 = vrot.lane.b32.xlu0 %v291, 15
        %v378 = vpop.permute.xlu0 %377
        %381 = vrot.lane.b32.xlu0 %v288, 15
        %v382 = vpop.permute.xlu0 %381
        %383 = vrot.lane.b32.xlu0 %v290, 15
        %v384 = vpop.permute.xlu0 %383
        %vm385 = vcmask 121856
        %v386 = vsel %vm385, %v382, %v376
        %v387 = vsel %vm385, %v384, %v378
        %v392 = vsel %vm385, %v376, %v382
        %v393 = vsel %vm385, %v378, %v384
        %s394 = scalar_lea.vmem [#allocation5], 2
        %v395 = vld [vmem:[%s394] ss:$8 sm:$0x3]
        %v397 = vlaneseq
        %v398 = vshrl.u32 %v397, 7
        %v399 = vsub.s32 0, %v398
        %v400 = vrot.slane %v395, %v399
        %v401 = vlaneseq
        %v402 = vshrl.u32 %v401, 7
        %v403 = vsub.s32 1, %v402
        %v404 = vrot.slane %v395, %v403
        %v407 = vmul.f32 %v392, %v400
        %v408 = vmul.f32 %v386, %v404
        %v409 = vmul.f32 %v393, %v400
        %v410 = vmul.f32 %v387, %v404
        %v411 = vpack.c.bf16 %v409, %v407
        %v412 = vpack.c.bf16 %v410, %v408
        %413 = vst [vmem:[#allocation2 + $0x20] sm:$0xff] %v411
        %414 = vst [vmem:[#allocation2 + $0x28] sm:$0xff] %v412
        %415 = vrot.lane.b32.xlu0 %v289, 1
        %v416 = vpop.permute.xlu0 %415
        %417 = vrot.lane.b32.xlu0 %v291, 1
        %v418 = vpop.permute.xlu0 %417
        %421 = vrot.lane.b32.xlu0 %v288, 1
        %v422 = vpop.permute.xlu0 %421
        %423 = vrot.lane.b32.xlu0 %v290, 1
        %v424 = vpop.permute.xlu0 %423
        %vm425 = vcmask 7168
        %v426 = vsel %vm425, %v422, %v416
        %v427 = vsel %vm425, %v424, %v418
        %v432 = vsel %vm425, %v416, %v422
        %v433 = vsel %vm425, %v418, %v424
        %s434 = scalar_lea.vmem [#allocation5], 3
        %v435 = vld [vmem:[%s434] ss:$8 sm:$0x3]
        %v437 = vlaneseq
        %v438 = vshrl.u32 %v437, 7
        %v439 = vsub.s32 0, %v438
        %v440 = vrot.slane %v435, %v439
        %v441 = vlaneseq
        %v442 = vshrl.u32 %v441, 7
        %v443 = vsub.s32 1, %v442
        %v444 = vrot.slane %v435, %v443
        %v447 = vmul.f32 %v432, %v440
        %v448 = vmul.f32 %v426, %v444
        %v449 = vmul.f32 %v433, %v440
        %v450 = vmul.f32 %v427, %v444
        %v451 = vpack.c.bf16 %v449, %v447
        %v452 = vpack.c.bf16 %v450, %v448
        %453 = vst [vmem:[#allocation2 + $0x30] sm:$0xff] %v451
        %454 = vst [vmem:[#allocation2 + $0x38] sm:$0xff] %v452
        %v455 = vpack.c.bf16 %v290, %v288
        %v456 = vpack.c.bf16 %v291, %v289
        %457 = vst [vmem:[#allocation2 + $0x40] sm:$0xff] %v455
        %458 = vst [vmem:[#allocation2 + $0x48] sm:$0xff] %v456
        %459 = vrot.lane.b32.xlu0 %v288, 127
        %v460 = vpop.permute.xlu0 %459
        %461 = vrot.lane.b32.xlu0 %v289, 127
        %v462 = vpop.permute.xlu0 %461
        %463 = vrot.lane.b32.xlu0 %v290, 127
        %v464 = vpop.permute.xlu0 %463
        %465 = vrot.lane.b32.xlu0 %v291, 127
        %v466 = vpop.permute.xlu0 %465
        %vm467 = vcmask 1039360
        %v468 = vsel %vm467, %v460, %v462
        %v469 = vsel %vm467, %v464, %v466
        %v476 = vsel %vm467, %v462, %v460
        %v477 = vsel %vm467, %v466, %v464
        %s478 = scalar_lea.vmem [#allocation5], 5
        %v479 = vld [vmem:[%s478] ss:$8 sm:$0x3]
        %v481 = vlaneseq
        %v482 = vshrl.u32 %v481, 7
        %v483 = vsub.s32 0, %v482
        %v484 = vrot.slane %v479, %v483
        %v485 = vlaneseq
        %v486 = vshrl.u32 %v485, 7
        %v487 = vsub.s32 1, %v486
        %v488 = vrot.slane %v479, %v487
        %v491 = vmul.f32 %v468, %v484
        %v492 = vmul.f32 %v476, %v488
        %v493 = vmul.f32 %v469, %v484
        %v494 = vmul.f32 %v477, %v488
        %v495 = vpack.c.bf16 %v493, %v491
        %v496 = vpack.c.bf16 %v494, %v492
        %497 = vst [vmem:[#allocation2 + $0x50] sm:$0xff] %v495
        %498 = vst [vmem:[#allocation2 + $0x58] sm:$0xff] %v496
        %499 = vrot.lane.b32.xlu0 %v288, 113
        %v500 = vpop.permute.xlu0 %499
        %501 = vrot.lane.b32.xlu0 %v289, 113
        %v502 = vpop.permute.xlu0 %501
        %503 = vrot.lane.b32.xlu0 %v290, 113
        %v504 = vpop.permute.xlu0 %503
        %505 = vrot.lane.b32.xlu0 %v291, 113
        %v506 = vpop.permute.xlu0 %505
        %vm507 = vcmask 924672
        %v508 = vsel %vm507, %v500, %v502
        %v509 = vsel %vm507, %v504, %v506
        %v516 = vsel %vm507, %v502, %v500
        %v517 = vsel %vm507, %v506, %v504
        %s518 = scalar_lea.vmem [#allocation5], 6
        %v519 = vld [vmem:[%s518] ss:$8 sm:$0x3]
        %v521 = vlaneseq
        %v522 = vshrl.u32 %v521, 7
        %v523 = vsub.s32 0, %v522
        %v524 = vrot.slane %v519, %v523
        %v525 = vlaneseq
        %v526 = vshrl.u32 %v525, 7
        %v527 = vsub.s32 1, %v526
        %v528 = vrot.slane %v519, %v527
        %v531 = vmul.f32 %v508, %v524
        %v532 = vmul.f32 %v516, %v528
        %v533 = vmul.f32 %v509, %v524
        %v534 = vmul.f32 %v517, %v528
        %v535 = vpack.c.bf16 %v533, %v531
        %v536 = vpack.c.bf16 %v534, %v532
        %537 = vst [vmem:[#allocation2 + $0x60] sm:$0xff] %v535
        %538 = vst [vmem:[#allocation2 + $0x68] sm:$0xff] %v536
        %539 = vrot.lane.b32.xlu0 %v288, 112
        %v540 = vpop.permute.xlu0 %539
        %541 = vrot.lane.b32.xlu0 %v289, 112
        %v542 = vpop.permute.xlu0 %541
        %543 = vrot.lane.b32.xlu0 %v290, 112
        %v544 = vpop.permute.xlu0 %543
        %545 = vrot.lane.b32.xlu0 %v291, 112
        %v546 = vpop.permute.xlu0 %545
        %vm547 = vcmask 916480
        %v548 = vsel %vm547, %v540, %v542
        %v549 = vsel %vm547, %v544, %v546
        %v556 = vsel %vm547, %v542, %v540
        %v557 = vsel %vm547, %v546, %v544
        %s558 = scalar_lea.vmem [#allocation5], 7
        %v559 = vld [vmem:[%s558] ss:$8 sm:$0x3]
        %v561 = vlaneseq
        %v562 = vshrl.u32 %v561, 7
        %v563 = vsub.s32 0, %v562
        %v564 = vrot.slane %v559, %v563
        %v565 = vlaneseq
        %v566 = vshrl.u32 %v565, 7
        %v567 = vsub.s32 1, %v566
        %v568 = vrot.slane %v559, %v567
        %v571 = vmul.f32 %v548, %v564
        %v572 = vmul.f32 %v556, %v568
        %v573 = vmul.f32 %v549, %v564
        %v574 = vmul.f32 %v557, %v568
        %v575 = vpack.c.bf16 %v573, %v571
        %v576 = vpack.c.bf16 %v574, %v572
        %577 = vst [vmem:[#allocation2 + $0x70] sm:$0xff] %v575
        %578 = vst [vmem:[#allocation2 + $0x78] sm:$0xff] %v576
        %579 = vrot.lane.b32.xlu0 %v288, 111
        %v580 = vpop.permute.xlu0 %579
        %581 = vrot.lane.b32.xlu0 %v289, 111
        %v582 = vpop.permute.xlu0 %581
        %583 = vrot.lane.b32.xlu0 %v290, 111
        %v584 = vpop.permute.xlu0 %583
        %585 = vrot.lane.b32.xlu0 %v291, 111
        %v586 = vpop.permute.xlu0 %585
        %vm587 = vcmask 908288
        %v588 = vsel %vm587, %v580, %v582
        %v589 = vsel %vm587, %v584, %v586
        %v596 = vsel %vm587, %v582, %v580
        %v597 = vsel %vm587, %v586, %v584
        %s598 = scalar_lea.vmem [#allocation5], 16
        %v599 = vld [vmem:[%s598] ss:$8 sm:$0x3]
        %v601 = vlaneseq
        %v602 = vshrl.u32 %v601, 7
        %v603 = vsub.s32 0, %v602
        %v604 = vrot.slane %v599, %v603
        %v605 = vlaneseq
        %v606 = vshrl.u32 %v605, 7
        %v607 = vsub.s32 1, %v606
        %v608 = vrot.slane %v599, %v607
        %v611 = vmul.f32 %v588, %v604
        %v612 = vmul.f32 %v596, %v608
        %v613 = vmul.f32 %v589, %v604
        %v614 = vmul.f32 %v597, %v608
        %v615 = vpack.c.bf16 %v613, %v611
        %v616 = vpack.c.bf16 %v614, %v612
        %617 = vst [vmem:[#allocation2 + $0x80] sm:$0xff] %v615
        %618 = vst [vmem:[#allocation2 + $0x88] sm:$0xff] %v616
        %v619 = vld [vmem:[%s2] sm:$0xf]
        %v620 = vld [vmem:[#allocation2] sm:$0xff]
        %v621 = vld [vmem:[#allocation2 + $0x8] sm:$0xff]
        %v622 = vld [vmem:[#allocation2 + $0x10] sm:$0xff]
        %v623 = vld [vmem:[#allocation2 + $0x18] sm:$0xff]
        %v624 = vld [vmem:[#allocation2 + $0x20] sm:$0xff]
        %v625 = vld [vmem:[#allocation2 + $0x28] sm:$0xff]
        %v626 = vld [vmem:[#allocation2 + $0x30] sm:$0xff]
        %v627 = vld [vmem:[#allocation2 + $0x38] sm:$0xff]
        %v628 = vld [vmem:[#allocation2 + $0x40] sm:$0xff]
        %v629 = vld [vmem:[#allocation2 + $0x48] sm:$0xff]
        %v630 = vld [vmem:[#allocation2 + $0x50] sm:$0xff]
        %v631 = vld [vmem:[#allocation2 + $0x58] sm:$0xff]
        %v632 = vld [vmem:[#allocation2 + $0x60] sm:$0xff]
        %v633 = vld [vmem:[#allocation2 + $0x68] sm:$0xff]
        %v634 = vld [vmem:[#allocation2 + $0x70] sm:$0xff]
        %v635 = vld [vmem:[#allocation2 + $0x78] sm:$0xff]
        %v636 = vld [vmem:[#allocation2 + $0x80] sm:$0xff]
        %v637 = vld [vmem:[#allocation2 + $0x88] sm:$0xff]
        %v638 = vld [vmem:[%s3] sm:$0xf]
        %640 = vset.pattern.permute.xlu0 0
        %641 = vperm.xlu0 %640, %v638
        %v642 = vpop.permute.xlu0 %641
        %v646 = vunpack.c.l.s4 1983009808
        %v647 = vunpack.c.0.s8 %v646
        %v648 = vlaneseq
        %v649 = vshrl.u32 %v648, 7
        %v650 = vsub.s32 %v647, %v649
        %v651 = vrot.slane %v619, %v650
        %v652 = vcombine.high %v651, %v651
        %v655 = vsel %vm345, %v652, 0
        %657 = vmatprep.subr.bf16.mxu0 %v621
        %658 = vmatpush1.bf16.msra.mxu0 %v620
        %659 = vmatprep.subr.bf16.mxu0 %v623
        %660 = vmatpush1.bf16.msra.mxu0 %v622
        %661 = vmatprep.subr.bf16.mxu0 %v625
        %662 = vmatpush1.bf16.msra.mxu0 %v624
        %663 = vmatprep.subr.bf16.mxu0 %v627
        %664 = vmatpush1.bf16.msra.mxu0 %v626
        %665 = vmatprep.subr.bf16.mxu0 %v629
        %666 = vmatpush1.bf16.msra.mxu0 %v628
        %667 = vmatprep.subr.bf16.mxu0 %v631
        %668 = vmatpush1.bf16.msra.mxu0 %v630
        %669 = vmatprep.subr.bf16.mxu0 %v633
        %670 = vmatpush1.bf16.msra.mxu0 %v632
        %671 = vmatprep.subr.bf16.mxu0 %v635
        %672 = vmatpush1.bf16.msra.mxu0 %v634
        %673 = vmatprep.subr.bf16.mxu0 %v637
        %674 = vmatpush1.bf16.msra.mxu0 %v636
        %675 = vmatprep.subr.bf16.mxu0 0
        %676 = vmatpush1.bf16.msra.mxu0 0
        %677 = vmatprep.subr.bf16.mxu0 0
        %678 = vmatpush1.bf16.msra.mxu0 0
        %679 = vmatprep.subr.bf16.mxu0 0
        %680 = vmatpush1.bf16.msra.mxu0 0
        %681 = vmatprep.subr.bf16.mxu0 0
        %682 = vmatpush1.bf16.msra.mxu0 0
        %683 = vmatprep.subr.bf16.mxu0 0
        %684 = vmatpush1.bf16.msra.mxu0 0
        %685 = vmatprep.subr.bf16.mxu0 0
        %686 = vmatpush1.bf16.msra.mxu0 0
        %687 = vmatprep.subr.bf16.mxu0 0
        %688 = vmatpush1.bf16.msra.mxu0 0
        %689 = vmatprep.mubr.bf16.mxu0 %v655
        %690 = vmatmul.mubr.bf16.gmra.mrb[0].mxu0 %v651
        %v691 = vpop.f32.mrb[0].mxu0
        %v692 = vadd.f32 %v642, %v691
        %v693 = vpop.f32.mrb[0].mxu0
        %v694 = vadd.f32 %v642, %v693
        %v695 = vpop.f32.mrb[0].mxu0
        %v696 = vpop.f32.mrb[0].mxu0
        %697 = vdwg.mxu0
        %v698 = vmax.f32 %v692, 0.0
        %v699 = vmax.f32 %v694, 0.0
        %v700 = vld [vmem:[%s4] sm:$0x3f]
        %702 = vset.pattern.permute.xlu0 0
        %703 = vperm.xlu0 %702, %v700
        %v704 = vpop.permute.xlu0 %703
        %v706 = vlaneseq
        %v707 = vshrl.u32 %v706, 7
        %v708 = vsub.s32 0, %v707
        %v709 = vrot.slane %v698, %v708
        %v710 = vlaneseq
        %v711 = vshrl.u32 %v710, 7
        %v712 = vsub.s32 0, %v711
        %v713 = vrot.slane %v699, %v712
        %v714 = vmul.f32 %v704, %v709
        %v715 = vmul.f32 %v704, %v713
        %716 = vset.pattern.permute.xlu0 1
        %717 = vperm.xlu0 %716, %v700
        %v718 = vpop.permute.xlu0 %717
        %v720 = vlaneseq
        %v721 = vshrl.u32 %v720, 7
        %v722 = vsub.s32 1, %v721
        %v723 = vrot.slane %v698, %v722
        %v724 = vlaneseq
        %v725 = vshrl.u32 %v724, 7
        %v726 = vsub.s32 1, %v725
        %v727 = vrot.slane %v699, %v726
        %v728 = vmul.f32 %v718, %v723
        %v729 = vmul.f32 %v718, %v727
        %v730 = vadd.f32 %v714, %v728
        %v731 = vadd.f32 %v715, %v729
        %732 = vset.pattern.permute.xlu0 2
        %733 = vperm.xlu0 %732, %v700
        %v734 = vpop.permute.xlu0 %733
        %v736 = vlaneseq
        %v737 = vshrl.u32 %v736, 7
        %v738 = vsub.s32 2, %v737
        %v739 = vrot.slane %v698, %v738
        %v740 = vlaneseq
        %v741 = vshrl.u32 %v740, 7
        %v742 = vsub.s32 2, %v741
        %v743 = vrot.slane %v699, %v742
        %v744 = vmul.f32 %v734, %v739
        %v745 = vmul.f32 %v734, %v743
        %v746 = vadd.f32 %v730, %v744
        %v747 = vadd.f32 %v731, %v745
        %748 = vset.pattern.permute.xlu0 3
        %749 = vperm.xlu0 %748, %v700
        %v750 = vpop.permute.xlu0 %749
        %v752 = vlaneseq
        %v753 = vshrl.u32 %v752, 7
        %v754 = vsub.s32 3, %v753
        %v755 = vrot.slane %v698, %v754
        %v756 = vlaneseq
        %v757 = vshrl.u32 %v756, 7
        %v758 = vsub.s32 3, %v757
        %v759 = vrot.slane %v699, %v758
        %v760 = vmul.f32 %v750, %v755
        %v761 = vmul.f32 %v750, %v759
        %v762 = vadd.f32 %v746, %v760
        %v763 = vadd.f32 %v747, %v761
        %v764 = vld [vmem:[%s5] sm:$0x3f]
        %766 = vset.pattern.permute.xlu0 0
        %767 = vperm.xlu0 %766, %v764
        %v768 = vpop.permute.xlu0 %767
        %v770 = vadd.f32 %v762, %v768
        %v771 = vadd.f32 %v763, %v768
        %772 = vst [vmem:[%s286] sm:$0x3f] %v770
        %773 = vst [vmem:[%s286 + $0x8] sm:$0x3f] %v771
        %p774 = scmp.lt.s32.totalorder %s21, 1
        %s775 = scalar_select %p774, %s21, 1
        %s776 = smul.addr %s775, 2
        %s777 = smul.addr %s776, 8
        %s778 = scalar_lea.vmem %s6, %s777
        // Predicated region
        $region53: #{tpu_custom_call.1} parent=43 // pred_check
          %p779 = pneg %p170
        $region54: #{tpu_custom_call.1} parent=43 // pred_check_branch
          %781 = sbr.rel (%p779) target = $region56
        $region55: #{tpu_custom_call.1} parent=43 // pred_region
          _
        $region56: #{tpu_custom_call.1} parent=43 // pred_fallthru
          _
      $region44: #{tpu_custom_call.1} parent=5 // pred_fallthru
        _
      %p782 = scmp.le.s32.totalorder 2, %s16
      // Predicated region
      $region57: #{tpu_custom_call.1} parent=5 // pred_check
        %p783 = pneg %p782
      $region58: #{tpu_custom_call.1} parent=5 // pred_check_branch
        %785 = sbr.rel (%p783) target = $region60
      $region59: #{tpu_custom_call.1} parent=5 // pred_region
        %s786 = ssub.s32 %s16, 2
        // Predicated region
        $region61: #{tpu_custom_call.1} parent=59 // pred_check
          %p787 = pneg %p176
        $region62: #{tpu_custom_call.1} parent=59 // pred_check_branch
          %789 = sbr.rel (%p787) target = $region64
        $region63: #{tpu_custom_call.1} parent=59 // pred_region
          %p790 = scmp.lt.s32.totalorder %s22, 1
          %s791 = scalar_select %p790, %s22, 1
          %s792 = smul.addr %s791, 2
          %s793 = smul.addr %s792, 8
          %s794 = scalar_lea.vmem %s6, %s793
        $region64: #{tpu_custom_call.1} parent=59 // pred_fallthru
          _
      $region60: #{tpu_custom_call.1} parent=5 // pred_fallthru
        _
    $region6: #{tpu_custom_call.1} parent=1 // loop_footer
      %s20 = sadd.s32 1, %s16
    $region7: #{tpu_custom_call.1} parent=1 // loop_footer_branch
      %15 = sbr.rel target = $region3
    $region8: #{tpu_custom_call.1} parent=1 // loop_exit
      _
    %795 = vsyncpa [#allocation4], 1
    %s796 = scalar_lea.sflag [#allocation4], 1
    %797 = vsyncpa %s796, 1
    %798 = vsyncpa [#allocation6], 1

</llo_original>
